<compile_context>
chip_gen: v7x
topology: tpu7x:2x2x1
jax: 0.10.0
libtpu: 0.0.40
codegen_flags: <defaults>
</compile_context>

<pallas_src>
import functools
import math

import jax
import jax.numpy as jnp
from jax.experimental import pallas as pl
from jax.experimental.pallas import tpu as pltpu

IN_FEATURES = 28 * 28  # 784
COMPUTE_DTYPE = jnp.bfloat16  # MXU input dtype (acc + epilogue stay f32)


def _apply_activation(y, activation):
    # f32 elementwise math (VPU/EUP friendly on all generations).
    if activation == "ReLU":
        return jnp.maximum(y, 0.0)
    if activation == "TanH":
        return jnp.tanh(y)
    if activation == "Leaky ReLU":
        return jnp.where(y >= 0.0, y, 0.01 * y)  # nn.LeakyReLU default slope
    return y  # unknown name -> no activation layer appended (matches PyTorch)


# ------------------------------ Pallas kernel ------------------------------ #

def _fused_mlp_kernel(*refs, n_layers, activation, compute_dtype):
    """Whole MLP in one kernel invocation.

    refs = [x, w_1, b_1, ..., w_n, b_n, out]
      x   : (TB, 784)      compute_dtype, VMEM
      w_i : (in_i, out_i)  compute_dtype, VMEM (pre-transposed, unpadded)
      b_i : (1, out_i)     f32, VMEM
      out : (TB, out_n)    f32, VMEM
    Hidden activations are carried in vregs only (no scratch round-trip).
    """
    x_ref = refs[0]
    wb_refs = refs[1:1 + 2 * n_layers]
    o_ref = refs[1 + 2 * n_layers]

    h = x_ref[...]
    for i in range(n_layers):
        w = wb_refs[2 * i][...]
        b = wb_refs[2 * i + 1][...]
        y = jnp.dot(h, w, preferred_element_type=jnp.float32)  # MXU, f32 acc
        y = _apply_activation(y + b, activation)                # f32 epilogue
        if i + 1 < n_layers:
            h = y.astype(compute_dtype)  # stays in vregs; bf16 for next MXU pass
        else:
            o_ref[...] = y.astype(o_ref.dtype)


# ---------------------------- Parameter handling ---------------------------- #

def init_params(network_config, key):
    """PyTorch-style Linear init: U(-1/sqrt(fan_in), +1/sqrt(fan_in)); layout (out, in)."""
    params = []
    neurons = network_config["neuronsPerLayer"]
    for i in range(network_config["layers"]):
        fan_in = IN_FEATURES if i == 0 else neurons[i - 1]
        fan_out = neurons[i]
        key, kw, kb = jax.random.split(key, 3)
        bound = 1.0 / math.sqrt(fan_in)
        w = jax.random.uniform(kw, (fan_out, fan_in), jnp.float32, -bound, bound)
        b = jax.random.uniform(kb, (fan_out,), jnp.float32, -bound, bound)
        params.append((w, b))
    return params


def prepare_params(params):
    """One-time prep (hoisted out of forward): transpose to (in, out), cast the
    weights to the bf16 MXU dtype, keep biases f32 as (1, out). No lane padding
    (small-batch regime is weight-DMA bound; Mosaic masks the sub-128 N)."""
    prepped = []
    prev = IN_FEATURES
    for (w, b) in params:
        out_true, in_true = w.shape
        assert in_true == prev
        w_t = jnp.transpose(w).astype(COMPUTE_DTYPE)          # (in, out)
        b_p = b.reshape(1, out_true).astype(jnp.float32)      # (1, out)
        prepped.append((w_t, b_p))
        prev = out_true
    return prepped


# --------------------------------- Forward ---------------------------------- #

def feedforward_nn_forward(x, prepped_params, network_config, *, block_batch=256):
    """Mirrors FeedForwardNN.forward: flatten to (B, 784), then fused MLP."""
    activation = network_config["activationsPerLayer"][0]
    n_layers = len(prepped_params)
    out_dim = network_config["neuronsPerLayer"][-1]

    h = x.reshape(-1, IN_FEATURES).astype(COMPUTE_DTYPE)  # bf16 x -> half DMA bytes
    B = h.shape[0]

    flat_inputs = [h]
    for (w, b) in prepped_params:
        flat_inputs.append(w)
        flat_inputs.append(b)

    kernel = functools.partial(
        _fused_mlp_kernel, n_layers=n_layers, activation=activation,
        compute_dtype=COMPUTE_DTYPE)

    out_shape = jax.ShapeDtypeStruct((B, out_dim), jnp.float32)

    if B > block_batch and B % block_batch == 0:
        # Realistic-batch path: 1-D grid over batch. x/out are streamed in
        # TB-row blocks (double-buffered DMA overlapped with the matmuls);
        # weights/biases use a constant index_map so they stay VMEM-resident
        # across grid steps. "parallel" lets v7x shard steps over both TCs.
        tb = block_batch
        in_specs = [pl.BlockSpec((tb, IN_FEATURES), lambda i: (i, 0))]
        for (w, b) in prepped_params:
            in_specs.append(pl.BlockSpec(w.shape, lambda i: (0, 0)))
            in_specs.append(pl.BlockSpec(b.shape, lambda i: (0, 0)))
        out = pl.pallas_call(
            kernel,
            out_shape=out_shape,
            grid=(B // tb,),
            in_specs=in_specs,
            out_specs=pl.BlockSpec((tb, out_dim), lambda i: (i, 0)),
            compiler_params=pltpu.CompilerParams(
                dimension_semantics=("parallel",),
                # Explicit limit: safe on v7x's 64 MiB physical VMEM too.
                vmem_limit_bytes=32 * 1024 * 1024),
        )(*flat_inputs)
    else:
        # Tiny-batch path: no grid (a split would be pure overhead); whole
        # arrays live in VMEM, no host-side pad/slice needed.
        out = pl.pallas_call(
            kernel,
            out_shape=out_shape,
            in_specs=[pl.BlockSpec(memory_space=pltpu.MemorySpace.VMEM)
                      for _ in flat_inputs],
            out_specs=pl.BlockSpec(memory_space=pltpu.MemorySpace.VMEM),
        )(*flat_inputs)

    return out


def feedforward_nn_reference(x, params, network_config):
    """Pure-JAX f32 reference (same semantics, full precision) for verification."""
    activation = network_config["activationsPerLayer"][0]
    h = x.reshape(-1, IN_FEATURES).astype(jnp.float32)
    for (w, b) in params:
        y = jnp.dot(h, w.T, precision=jax.lax.Precision.HIGHEST) + b
        h = _apply_activation(y, activation)
    return h


# ----------------------------------- Main ----------------------------------- #

if __name__ == "__main__":
    # TODO(synk): training utilities of Server.py (optim, DataLoader) are out of
    # scope; only the forward pass is implemented.
    network_config = {
        "layers": 2,
        "neuronsPerLayer": [32, 16],
        "activationsPerLayer": ["ReLU", "ReLU"],
    }

    key = jax.random.PRNGKey(0)
    key, kx = jax.random.split(key)
    # MNIST-like NCHW input, small batch -> no-grid VMEM path.
    x = jax.random.normal(kx, (2, 1, 28, 28), dtype=jnp.float32)

    params = init_params(network_config, key)
    prepped = prepare_params(params)   # one-time transpose + bf16 cast (not per forward)

    fwd = jax.jit(lambda inp, p: feedforward_nn_forward(inp, p, network_config))

    out = jax.block_until_ready(fwd(x, prepped))
    assert out.shape == (2, network_config["neuronsPerLayer"][-1])
    ref = feedforward_nn_reference(x, params, network_config)
    max_err = float(jnp.max(jnp.abs(out - ref)))
    # Tolerance covers bf16 MXU inputs (f32 accumulate) vs f32 HIGHEST reference.
    assert max_err < 2e-2, f"mismatch vs reference (small batch): {max_err}"

    # Larger batch exercises the batch-grid / dual-TensorCore / streaming path.
    key, kb = jax.random.split(key)
    xb = jax.random.normal(kb, (512, 1, 28, 28), dtype=jnp.float32)
    out_b = jax.block_until_ready(fwd(xb, prepped))
    assert out_b.shape == (512, network_config["neuronsPerLayer"][-1])
    ref_b = feedforward_nn_reference(xb, params, network_config)
    max_err_b = float(jnp.max(jnp.abs(out_b - ref_b)))
    assert max_err_b < 2e-2, f"mismatch vs reference (batch grid): {max_err_b}"

    print("KERNEL_OK")
</pallas_src>

<mosaic_0001>
module attributes {stable_mosaic.version = 11 : i64} {
  func.func @_fused_mlp_kernel(%arg0: memref<2x784xbf16, #tpu.memory_space<vmem>>, %arg1: memref<784x32xbf16, #tpu.memory_space<vmem>>, %arg2: memref<1x32xf32, #tpu.memory_space<vmem>>, %arg3: memref<32x16xbf16, #tpu.memory_space<vmem>>, %arg4: memref<1x16xf32, #tpu.memory_space<vmem>>, %arg5: memref<2x16xf32, #tpu.memory_space<vmem>>) attributes {dimension_semantics = [], scalar_prefetch = 0 : i64, scratch_operands = 0 : i64, tpu.core_type = #tpu.core_type<tc>} {
    %c0 = arith.constant 0 : index
    %c0_0 = arith.constant 0 : index
    %0 = vector.load %arg0[%c0, %c0_0] : memref<2x784xbf16, #tpu.memory_space<vmem>>, vector<2x784xbf16>
    %c0_1 = arith.constant 0 : index
    %c0_2 = arith.constant 0 : index
    %1 = vector.load %arg1[%c0_1, %c0_2] : memref<784x32xbf16, #tpu.memory_space<vmem>>, vector<784x32xbf16>
    %c0_3 = arith.constant 0 : index
    %c0_4 = arith.constant 0 : index
    %2 = vector.load %arg2[%c0_3, %c0_4] : memref<1x32xf32, #tpu.memory_space<vmem>>, vector<1x32xf32>
    %cst = arith.constant dense<0.000000e+00> : vector<2x32xf32>
    %3 = tpu.matmul %0, %1, %cst {dimension_numbers = #tpu.dot_dimension_numbers<[1], [0], [0], [1], [0, 0, 1, 1], [], []>} : vector<2x784xbf16>, vector<784x32xbf16>, vector<2x32xf32> -> vector<2x32xf32>
    %4 = vector.broadcast %2 : vector<1x32xf32> to vector<2x32xf32>
    %5 = arith.addf %3, %4 : vector<2x32xf32>
    %cst_5 = arith.constant 0.000000e+00 : f32
    %6 = vector.broadcast %cst_5 : f32 to vector<2x32xf32>
    %7 = arith.maximumf %5, %6 : vector<2x32xf32>
    %8 = arith.truncf %7 : vector<2x32xf32> to vector<2x32xbf16>
    %c0_6 = arith.constant 0 : index
    %c0_7 = arith.constant 0 : index
    %9 = vector.load %arg3[%c0_6, %c0_7] : memref<32x16xbf16, #tpu.memory_space<vmem>>, vector<32x16xbf16>
    %c0_8 = arith.constant 0 : index
    %c0_9 = arith.constant 0 : index
    %10 = vector.load %arg4[%c0_8, %c0_9] : memref<1x16xf32, #tpu.memory_space<vmem>>, vector<1x16xf32>
    %cst_10 = arith.constant dense<0.000000e+00> : vector<2x16xf32>
    %11 = tpu.matmul %8, %9, %cst_10 {dimension_numbers = #tpu.dot_dimension_numbers<[1], [0], [0], [1], [0, 0, 1, 1], [], []>} : vector<2x32xbf16>, vector<32x16xbf16>, vector<2x16xf32> -> vector<2x16xf32>
    %12 = vector.broadcast %10 : vector<1x16xf32> to vector<2x16xf32>
    %13 = arith.addf %11, %12 : vector<2x16xf32>
    %cst_11 = arith.constant 0.000000e+00 : f32
    %14 = vector.broadcast %cst_11 : f32 to vector<2x16xf32>
    %15 = arith.maximumf %13, %14 : vector<2x16xf32>
    %c0_12 = arith.constant 0 : index
    %c0_13 = arith.constant 0 : index
    %16 = vector.load %arg5[%c0_12, %c0_13] : memref<2x16xf32, #tpu.memory_space<vmem>>, vector<2x16xf32>
    tpu.vector_store %arg5[%c0_12, %c0_13], %15 {strides = array<i32>} : memref<2x16xf32, #tpu.memory_space<vmem>>, vector<2x16xf32>,
    return
  }
}

</mosaic_0001>

<llo_original>
// kernel: _lambda_.1
$region0: #{_lambda_.1}
  #allocation0 [shape = 'u32[]', space=smem, size = 0x4, offset = 0x4, fixed_abs, tag = 'smem constant byte address 0x4 - core index']
  #allocation1 [shape = 'u32[144,128]{1,0:T(1,128)}', space=vmem, size = 0x12000, scoped, tag = 'internal scratch']
  %s0 = inlined_call_operand.vmem [shape: bf16[2,784], index: 0, kind: input, shape index: {}]
  %s1 = inlined_call_operand.vmem [shape: bf16[784,32], index: 1, kind: input, shape index: {}]
  %s2 = inlined_call_operand.vmem [shape: f32[1,32], index: 2, kind: input, shape index: {}]
  %s3 = inlined_call_operand.vmem [shape: bf16[32,16], index: 3, kind: input, shape index: {}]
  %s4 = inlined_call_operand.vmem [shape: f32[1,16], index: 4, kind: input, shape index: {}]
  %s5 = inlined_call_operand.hbm [shape: f32[2,16], index: 5, kind: output, shape index: {}]
  %s6 = sld [smem:[#allocation0]]
  $region30: #{_lambda_.1} parent=0
    _
  %s8 = ssub.s32 1, %s6
  %s9 = scalar_select 0, %s8, %s6
  $region1: #{_lambda_.1} parent=0
    #allocation2 [shape = 'u8[1024]{0}', space=vmem, size = 0x400, scoped, tag = 'output window, operand 0, single buffered']
    #allocation3 [shape = 's32[1]{0}', space=sflag, size = 0x4, scoped, tag = 'scoped memory for _lambda_.1']
    %10 = vsyncpa [#allocation3], 0
    // Predicated region
    $region2: #{_lambda_.1} parent=1 // pred_check
      _
    $region3: #{_lambda_.1} parent=1 // pred_check_branch
      %12 = sbr.rel (0) target = $region5
    $region4: #{_lambda_.1} parent=1 // pred_region
      _
    $region5: #{_lambda_.1} parent=1 // pred_fallthru
      _
    // Predicated region
    $region6: #{_lambda_.1} parent=1 // pred_check
      _
    $region7: #{_lambda_.1} parent=1 // pred_check_branch
      %14 = sbr.rel (0) target = $region9
    $region8: #{_lambda_.1} parent=1 // pred_region
      _
    $region9: #{_lambda_.1} parent=1 // pred_fallthru
      _
    // Predicated region
    $region10: #{_lambda_.1} parent=1 // pred_check
      _
    $region11: #{_lambda_.1} parent=1 // pred_check_branch
      %16 = sbr.rel (0) target = $region13
    $region12: #{_lambda_.1} parent=1 // pred_region
      _
    $region13: #{_lambda_.1} parent=1 // pred_fallthru
      _
    // Predicated region
    $region14: #{_lambda_.1} parent=1 // pred_check
      _
    $region15: #{_lambda_.1} parent=1 // pred_check_branch
      %18 = sbr.rel (0) target = $region17
    $region16: #{_lambda_.1} parent=1 // pred_region
      _
    $region17: #{_lambda_.1} parent=1 // pred_fallthru
      _
    // Predicated region
    $region18: #{_lambda_.1} parent=1 // pred_check
      _
    $region19: #{_lambda_.1} parent=1 // pred_check_branch
      %20 = sbr.rel (0) target = $region21
    $region20: #{_lambda_.1} parent=1 // pred_region
      _
    $region21: #{_lambda_.1} parent=1 // pred_fallthru
      _
    %v22 = vld [vmem:[%s0] sm:$0x7f]
    %v23 = vld [vmem:[%s1] sm:$0xf]
    %v24 = vld [vmem:[%s1 + $0x4] sm:$0xf]
    %v25 = vld [vmem:[%s1 + $0x8] sm:$0xf]
    %v26 = vld [vmem:[%s1 + $0xc] sm:$0xf]
    %v27 = vld [vmem:[%s1 + $0x10] sm:$0xf]
    %v28 = vld [vmem:[%s1 + $0x14] sm:$0xf]
    %v29 = vld [vmem:[%s1 + $0x18] sm:$0xf]
    %v30 = vld [vmem:[%s1 + $0x1c] sm:$0xf]
    %v31 = vld [vmem:[%s1 + $0x20] sm:$0xf]
    %v32 = vld [vmem:[%s1 + $0x24] sm:$0xf]
    %v33 = vld [vmem:[%s1 + $0x28] sm:$0xf]
    %v34 = vld [vmem:[%s1 + $0x2c] sm:$0xf]
    %v35 = vld [vmem:[%s1 + $0x30] sm:$0xf]
    %v36 = vld [vmem:[%s1 + $0x34] sm:$0xf]
    %v37 = vld [vmem:[%s1 + $0x38] sm:$0xf]
    %v38 = vld [vmem:[%s1 + $0x3c] sm:$0xf]
    %v39 = vld [vmem:[%s1 + $0x40] sm:$0xf]
    %v40 = vld [vmem:[%s1 + $0x44] sm:$0xf]
    %v41 = vld [vmem:[%s1 + $0x48] sm:$0xf]
    %v42 = vld [vmem:[%s1 + $0x4c] sm:$0xf]
    %v43 = vld [vmem:[%s1 + $0x50] sm:$0xf]
    %v44 = vld [vmem:[%s1 + $0x54] sm:$0xf]
    %v45 = vld [vmem:[%s1 + $0x58] sm:$0xf]
    %v46 = vld [vmem:[%s1 + $0x5c] sm:$0xf]
    %v47 = vld [vmem:[%s1 + $0x60] sm:$0xf]
    %v48 = vld [vmem:[%s1 + $0x64] sm:$0xf]
    %v49 = vld [vmem:[%s1 + $0x68] sm:$0xf]
    %v50 = vld [vmem:[%s1 + $0x6c] sm:$0xf]
    %v51 = vld [vmem:[%s1 + $0x70] sm:$0xf]
    %v52 = vld [vmem:[%s1 + $0x74] sm:$0xf]
    %v53 = vld [vmem:[%s1 + $0x78] sm:$0xf]
    %v54 = vld [vmem:[%s1 + $0x7c] sm:$0xf]
    %v55 = vld [vmem:[%s1 + $0x80] sm:$0xf]
    %v56 = vld [vmem:[%s1 + $0x84] sm:$0xf]
    %v57 = vld [vmem:[%s1 + $0x88] sm:$0xf]
    %v58 = vld [vmem:[%s1 + $0x8c] sm:$0xf]
    %v59 = vld [vmem:[%s1 + $0x90] sm:$0xf]
    %v60 = vld [vmem:[%s1 + $0x94] sm:$0xf]
    %v61 = vld [vmem:[%s1 + $0x98] sm:$0xf]
    %v62 = vld [vmem:[%s1 + $0x9c] sm:$0xf]
    %v63 = vld [vmem:[%s1 + $0xa0] sm:$0xf]
    %v64 = vld [vmem:[%s1 + $0xa4] sm:$0xf]
    %v65 = vld [vmem:[%s1 + $0xa8] sm:$0xf]
    %v66 = vld [vmem:[%s1 + $0xac] sm:$0xf]
    %v67 = vld [vmem:[%s1 + $0xb0] sm:$0xf]
    %v68 = vld [vmem:[%s1 + $0xb4] sm:$0xf]
    %v69 = vld [vmem:[%s1 + $0xb8] sm:$0xf]
    %v70 = vld [vmem:[%s1 + $0xbc] sm:$0xf]
    %v71 = vld [vmem:[%s1 + $0xc0] sm:$0xf]
    %v72 = vld [vmem:[%s1 + $0xc4] sm:$0xf]
    %v73 = vld [vmem:[%s1 + $0xc8] sm:$0xf]
    %v74 = vld [vmem:[%s1 + $0xcc] sm:$0xf]
    %v75 = vld [vmem:[%s1 + $0xd0] sm:$0xf]
    %v76 = vld [vmem:[%s1 + $0xd4] sm:$0xf]
    %v77 = vld [vmem:[%s1 + $0xd8] sm:$0xf]
    %v78 = vld [vmem:[%s1 + $0xdc] sm:$0xf]
    %v79 = vld [vmem:[%s1 + $0xe0] sm:$0xf]
    %v80 = vld [vmem:[%s1 + $0xe4] sm:$0xf]
    %v81 = vld [vmem:[%s1 + $0xe8] sm:$0xf]
    %v82 = vld [vmem:[%s1 + $0xec] sm:$0xf]
    %v83 = vld [vmem:[%s1 + $0xf0] sm:$0xf]
    %v84 = vld [vmem:[%s1 + $0xf4] sm:$0xf]
    %v85 = vld [vmem:[%s1 + $0xf8] sm:$0xf]
    %v86 = vld [vmem:[%s1 + $0xfc] sm:$0xf]
    %v87 = vld [vmem:[%s1 + $0x100] sm:$0xf]
    %v88 = vld [vmem:[%s1 + $0x104] sm:$0xf]
    %v89 = vld [vmem:[%s1 + $0x108] sm:$0xf]
    %v90 = vld [vmem:[%s1 + $0x10c] sm:$0xf]
    %v91 = vld [vmem:[%s1 + $0x110] sm:$0xf]
    %v92 = vld [vmem:[%s1 + $0x114] sm:$0xf]
    %v93 = vld [vmem:[%s1 + $0x118] sm:$0xf]
    %v94 = vld [vmem:[%s1 + $0x11c] sm:$0xf]
    %v95 = vld [vmem:[%s1 + $0x120] sm:$0xf]
    %v96 = vld [vmem:[%s1 + $0x124] sm:$0xf]
    %v97 = vld [vmem:[%s1 + $0x128] sm:$0xf]
    %v98 = vld [vmem:[%s1 + $0x12c] sm:$0xf]
    %v99 = vld [vmem:[%s1 + $0x130] sm:$0xf]
    %v100 = vld [vmem:[%s1 + $0x134] sm:$0xf]
    %v101 = vld [vmem:[%s1 + $0x138] sm:$0xf]
    %v102 = vld [vmem:[%s1 + $0x13c] sm:$0xf]
    %v103 = vld [vmem:[%s1 + $0x140] sm:$0xf]
    %v104 = vld [vmem:[%s1 + $0x144] sm:$0xf]
    %v105 = vld [vmem:[%s1 + $0x148] sm:$0xf]
    %v106 = vld [vmem:[%s1 + $0x14c] sm:$0xf]
    %v107 = vld [vmem:[%s1 + $0x150] sm:$0xf]
    %v108 = vld [vmem:[%s1 + $0x154] sm:$0xf]
    %v109 = vld [vmem:[%s1 + $0x158] sm:$0xf]
    %v110 = vld [vmem:[%s1 + $0x15c] sm:$0xf]
    %v111 = vld [vmem:[%s1 + $0x160] sm:$0xf]
    %v112 = vld [vmem:[%s1 + $0x164] sm:$0xf]
    %v113 = vld [vmem:[%s1 + $0x168] sm:$0xf]
    %v114 = vld [vmem:[%s1 + $0x16c] sm:$0xf]
    %v115 = vld [vmem:[%s1 + $0x170] sm:$0xf]
    %v116 = vld [vmem:[%s1 + $0x174] sm:$0xf]
    %v117 = vld [vmem:[%s1 + $0x178] sm:$0xf]
    %v118 = vld [vmem:[%s1 + $0x17c] sm:$0xf]
    %v119 = vld [vmem:[%s1 + $0x180] sm:$0xf]
    %v120 = vld [vmem:[%s1 + $0x184] sm:$0xf]
    %v121 = vld [vmem:[%s2] sm:$0x1]
    %v123 = vlaneseq
    %v124 = vshrl.u32 %v123, 7
    %v125 = vsub.s32 0, %v124
    %v126 = vrot.slane %v121, %v125
    %v129 = vcombine.high %v22, %v22
    %v131 = vunpack.c.l.s4 1966171168
    %v132 = vunpack.c.0.s8 %v131
    %v133 = vlaneseq
    %v134 = vshrl.u32 %v133, 7
    %v135 = vsub.s32 %v132, %v134
    %v136 = vrot.slane %v22, %v135
    %v138 = vunpack.c.l.s4 1966171168
    %v139 = vunpack.c.0.s8 %v138
    %v140 = vlaneseq
    %v141 = vshrl.u32 %v140, 7
    %v142 = vsub.s32 %v139, %v141
    %v143 = vrot.slane %v129, %v142
    %v144 = vcombine.high %v136, %v136
    %v145 = vcombine.high %v143, %v143
    %v147 = vunpack.c.l.s4 1966171168
    %v148 = vunpack.c.0.s8 %v147
    %v149 = vlaneseq
    %v150 = vshrl.u32 %v149, 7
    %v151 = vsub.s32 %v148, %v150
    %v152 = vrot.slane %v136, %v151
    %v154 = vunpack.c.l.s4 1966171168
    %v155 = vunpack.c.0.s8 %v154
    %v156 = vlaneseq
    %v157 = vshrl.u32 %v156, 7
    %v158 = vsub.s32 %v155, %v157
    %v159 = vrot.slane %v143, %v158
    %v161 = vunpack.c.l.s4 1966171168
    %v162 = vunpack.c.0.s8 %v161
    %v163 = vlaneseq
    %v164 = vshrl.u32 %v163, 7
    %v165 = vsub.s32 %v162, %v164
    %v166 = vrot.slane %v144, %v165
    %v168 = vunpack.c.l.s4 1966171168
    %v169 = vunpack.c.0.s8 %v168
    %v170 = vlaneseq
    %v171 = vshrl.u32 %v170, 7
    %v172 = vsub.s32 %v169, %v171
    %v173 = vrot.slane %v145, %v172
    %v174 = vcombine.high %v152, %v152
    %v175 = vcombine.high %v159, %v159
    %v176 = vcombine.high %v166, %v166
    %v281 = vunpack.c.l.b16 %v23
    %v282 = vunpack.c.l.b16 %v24
    %v283 = vunpack.c.l.b16 %v25
    %v284 = vunpack.c.l.b16 %v26
    %v285 = vunpack.c.l.b16 %v27
    %v286 = vunpack.c.l.b16 %v28
    %v287 = vunpack.c.l.b16 %v29
    %v288 = vunpack.c.l.b16 %v30
    %v289 = vunpack.c.l.b16 %v31
    %v290 = vunpack.c.l.b16 %v32
    %v291 = vunpack.c.l.b16 %v33
    %v292 = vunpack.c.l.b16 %v34
    %v293 = vunpack.c.l.b16 %v35
    %v294 = vunpack.c.l.b16 %v36
    %v295 = vunpack.c.l.b16 %v37
    %v296 = vunpack.c.l.b16 %v38
    %v297 = vunpack.c.l.b16 %v39
    %v298 = vunpack.c.l.b16 %v40
    %v299 = vunpack.c.l.b16 %v41
    %v300 = vunpack.c.l.b16 %v42
    %v301 = vunpack.c.l.b16 %v43
    %v302 = vunpack.c.l.b16 %v44
    %v303 = vunpack.c.l.b16 %v45
    %v304 = vunpack.c.l.b16 %v46
    %v305 = vunpack.c.l.b16 %v47
    %v306 = vunpack.c.l.b16 %v48
    %v307 = vunpack.c.l.b16 %v49
    %v308 = vunpack.c.l.b16 %v50
    %v309 = vunpack.c.l.b16 %v51
    %v310 = vunpack.c.l.b16 %v52
    %v311 = vunpack.c.l.b16 %v53
    %v312 = vunpack.c.l.b16 %v54
    %v313 = vunpack.c.l.b16 %v55
    %v314 = vunpack.c.l.b16 %v56
    %v315 = vunpack.c.l.b16 %v57
    %v316 = vunpack.c.l.b16 %v58
    %v317 = vunpack.c.l.b16 %v59
    %v318 = vunpack.c.l.b16 %v60
    %v319 = vunpack.c.l.b16 %v61
    %v320 = vunpack.c.l.b16 %v62
    %v321 = vunpack.c.l.b16 %v63
    %v322 = vunpack.c.l.b16 %v64
    %v323 = vunpack.c.l.b16 %v65
    %v324 = vunpack.c.l.b16 %v66
    %v325 = vunpack.c.l.b16 %v67
    %v326 = vunpack.c.l.b16 %v68
    %v327 = vunpack.c.l.b16 %v69
    %v328 = vunpack.c.l.b16 %v70
    %v329 = vunpack.c.l.b16 %v71
    %v330 = vunpack.c.l.b16 %v72
    %v331 = vunpack.c.l.b16 %v73
    %v332 = vunpack.c.l.b16 %v74
    %v333 = vunpack.c.l.b16 %v75
    %v334 = vunpack.c.l.b16 %v76
    %v335 = vunpack.c.l.b16 %v77
    %v336 = vunpack.c.l.b16 %v78
    %v337 = vunpack.c.l.b16 %v79
    %v338 = vunpack.c.l.b16 %v80
    %v339 = vunpack.c.l.b16 %v81
    %v340 = vunpack.c.l.b16 %v82
    %v341 = vunpack.c.l.b16 %v83
    %v342 = vunpack.c.l.b16 %v84
    %v343 = vunpack.c.l.b16 %v85
    %v344 = vunpack.c.l.b16 %v86
    %v345 = vunpack.c.l.b16 %v87
    %v346 = vunpack.c.l.b16 %v88
    %v347 = vunpack.c.l.b16 %v89
    %v348 = vunpack.c.l.b16 %v90
    %v349 = vunpack.c.l.b16 %v91
    %v350 = vunpack.c.l.b16 %v92
    %v351 = vunpack.c.l.b16 %v93
    %v352 = vunpack.c.l.b16 %v94
    %v353 = vunpack.c.l.b16 %v95
    %v354 = vunpack.c.l.b16 %v96
    %v355 = vunpack.c.l.b16 %v97
    %v356 = vunpack.c.l.b16 %v98
    %v357 = vunpack.c.l.b16 %v99
    %v358 = vunpack.c.l.b16 %v100
    %v359 = vunpack.c.l.b16 %v101
    %v360 = vunpack.c.l.b16 %v102
    %v361 = vunpack.c.l.b16 %v103
    %v362 = vunpack.c.l.b16 %v104
    %v363 = vunpack.c.l.b16 %v105
    %v364 = vunpack.c.l.b16 %v106
    %v365 = vunpack.c.l.b16 %v107
    %v366 = vunpack.c.l.b16 %v108
    %v367 = vunpack.c.l.b16 %v109
    %v368 = vunpack.c.l.b16 %v110
    %v369 = vunpack.c.l.b16 %v111
    %v370 = vunpack.c.l.b16 %v112
    %v371 = vunpack.c.l.b16 %v113
    %v372 = vunpack.c.l.b16 %v114
    %v373 = vunpack.c.l.b16 %v115
    %v374 = vunpack.c.l.b16 %v116
    %v375 = vunpack.c.l.b16 %v117
    %v376 = vunpack.c.l.b16 %v118
    %v377 = vunpack.c.l.b16 %v119
    %v378 = vunpack.c.l.b16 %v120
    %v379 = vpack.c.b16 %v282, %v281
    %v380 = vpack.c.b16 %v284, %v283
    %v381 = vpack.c.b16 %v286, %v285
    %v382 = vpack.c.b16 %v288, %v287
    %v383 = vpack.c.b16 %v290, %v289
    %v384 = vpack.c.b16 %v292, %v291
    %v385 = vpack.c.b16 %v294, %v293
    %v386 = vpack.c.b16 %v296, %v295
    %v387 = vpack.c.b16 %v298, %v297
    %v388 = vpack.c.b16 %v300, %v299
    %v389 = vpack.c.b16 %v302, %v301
    %v390 = vpack.c.b16 %v304, %v303
    %v391 = vpack.c.b16 %v306, %v305
    %v392 = vpack.c.b16 %v308, %v307
    %v393 = vpack.c.b16 %v310, %v309
    %v394 = vpack.c.b16 %v312, %v311
    %v395 = vpack.c.b16 %v314, %v313
    %v396 = vpack.c.b16 %v316, %v315
    %v397 = vpack.c.b16 %v318, %v317
    %v398 = vpack.c.b16 %v320, %v319
    %v399 = vpack.c.b16 %v322, %v321
    %v400 = vpack.c.b16 %v324, %v323
    %v401 = vpack.c.b16 %v326, %v325
    %v402 = vpack.c.b16 %v328, %v327
    %v403 = vpack.c.b16 %v330, %v329
    %v404 = vpack.c.b16 %v332, %v331
    %v405 = vpack.c.b16 %v334, %v333
    %v406 = vpack.c.b16 %v336, %v335
    %v407 = vpack.c.b16 %v338, %v337
    %v408 = vpack.c.b16 %v340, %v339
    %v409 = vpack.c.b16 %v342, %v341
    %v410 = vpack.c.b16 %v344, %v343
    %v411 = vpack.c.b16 %v346, %v345
    %v412 = vpack.c.b16 %v348, %v347
    %v413 = vpack.c.b16 %v350, %v349
    %v414 = vpack.c.b16 %v352, %v351
    %v415 = vpack.c.b16 %v354, %v353
    %v416 = vpack.c.b16 %v356, %v355
    %v417 = vpack.c.b16 %v358, %v357
    %v418 = vpack.c.b16 %v360, %v359
    %v419 = vpack.c.b16 %v362, %v361
    %v420 = vpack.c.b16 %v364, %v363
    %v421 = vpack.c.b16 %v366, %v365
    %v422 = vpack.c.b16 %v368, %v367
    %v423 = vpack.c.b16 %v370, %v369
    %v424 = vpack.c.b16 %v372, %v371
    %v425 = vpack.c.b16 %v374, %v373
    %v426 = vpack.c.b16 %v376, %v375
    %v427 = vpack.c.b16 %v378, %v377
    %vm477 = vcmask 130048
    %v479 = vsel %vm477, %v175, 0
    %481 = vmatprep.subr.bf16.mxu0 0
    %482 = vmatpush1.bf16.msra.mxu0 %v379
    %483 = vmatprep.subr.bf16.mxu0 0
    %484 = vmatpush1.bf16.msra.mxu0 %v380
    %485 = vmatprep.subr.bf16.mxu0 0
    %486 = vmatpush1.bf16.msra.mxu0 %v381
    %487 = vmatprep.subr.bf16.mxu0 0
    %488 = vmatpush1.bf16.msra.mxu0 %v382
    %489 = vmatprep.subr.bf16.mxu0 0
    %490 = vmatpush1.bf16.msra.mxu0 %v383
    %491 = vmatprep.subr.bf16.mxu0 0
    %492 = vmatpush1.bf16.msra.mxu0 %v384
    %493 = vmatprep.subr.bf16.mxu0 0
    %494 = vmatpush1.bf16.msra.mxu0 %v385
    %495 = vmatprep.subr.bf16.mxu0 0
    %496 = vmatpush1.bf16.msra.mxu0 %v386
    %497 = vmatprep.subr.bf16.mxu0 0
    %498 = vmatpush1.bf16.msra.mxu0 %v387
    %499 = vmatprep.subr.bf16.mxu0 0
    %500 = vmatpush1.bf16.msra.mxu0 %v388
    %501 = vmatprep.subr.bf16.mxu0 0
    %502 = vmatpush1.bf16.msra.mxu0 %v389
    %503 = vmatprep.subr.bf16.mxu0 0
    %504 = vmatpush1.bf16.msra.mxu0 %v390
    %505 = vmatprep.subr.bf16.mxu0 0
    %506 = vmatpush1.bf16.msra.mxu0 %v391
    %507 = vmatprep.subr.bf16.mxu0 0
    %508 = vmatpush1.bf16.msra.mxu0 %v392
    %509 = vmatprep.subr.bf16.mxu0 0
    %510 = vmatpush1.bf16.msra.mxu0 %v393
    %511 = vmatprep.subr.bf16.mxu0 0
    %512 = vmatpush1.bf16.msra.mxu0 %v394
    %513 = vmatprep.mubr.bf16.mxu0 %v166
    %514 = vmatmul.mubr.bf16.gmra.mrb[0].mxu0 %v152
    %v515 = vpop.f32.mrb[0].mxu0
    %v516 = vadd.f32 %v126, %v515
    %v517 = vpop.f32.mrb[0].mxu0
    %v518 = vpop.f32.mrb[0].mxu0
    %v519 = vpop.f32.mrb[0].mxu0
    %520 = vdwg.mxu0
    %521 = vmatprep.subr.bf16.mxu0 0
    %522 = vmatpush1.bf16.msra.mxu0 %v395
    %523 = vmatprep.subr.bf16.mxu0 0
    %524 = vmatpush1.bf16.msra.mxu0 %v396
    %525 = vmatprep.subr.bf16.mxu0 0
    %526 = vmatpush1.bf16.msra.mxu0 %v397
    %527 = vmatprep.subr.bf16.mxu0 0
    %528 = vmatpush1.bf16.msra.mxu0 %v398
    %529 = vmatprep.subr.bf16.mxu0 0
    %530 = vmatpush1.bf16.msra.mxu0 %v399
    %531 = vmatprep.subr.bf16.mxu0 0
    %532 = vmatpush1.bf16.msra.mxu0 %v400
    %533 = vmatprep.subr.bf16.mxu0 0
    %534 = vmatpush1.bf16.msra.mxu0 %v401
    %535 = vmatprep.subr.bf16.mxu0 0
    %536 = vmatpush1.bf16.msra.mxu0 %v402
    %537 = vmatprep.subr.bf16.mxu0 0
    %538 = vmatpush1.bf16.msra.mxu0 %v403
    %539 = vmatprep.subr.bf16.mxu0 0
    %540 = vmatpush1.bf16.msra.mxu0 %v404
    %541 = vmatprep.subr.bf16.mxu0 0
    %542 = vmatpush1.bf16.msra.mxu0 %v405
    %543 = vmatprep.subr.bf16.mxu0 0
    %544 = vmatpush1.bf16.msra.mxu0 %v406
    %545 = vmatprep.subr.bf16.mxu0 0
    %546 = vmatpush1.bf16.msra.mxu0 %v407
    %547 = vmatprep.subr.bf16.mxu0 0
    %548 = vmatpush1.bf16.msra.mxu0 %v408
    %549 = vmatprep.subr.bf16.mxu0 0
    %550 = vmatpush1.bf16.msra.mxu0 %v409
    %551 = vmatprep.subr.bf16.mxu0 0
    %552 = vmatpush1.bf16.msra.mxu0 %v410
    %553 = vmatprep.mubr.bf16.mxu0 %v176
    %554 = vmatmul.mubr.bf16.gmra.mrb[0].mxu0 %v174
    %v555 = vpop.f32.mrb[0].mxu0
    %v556 = vadd.f32 %v516, %v555
    %v557 = vpop.f32.mrb[0].mxu0
    %v558 = vpop.f32.mrb[0].mxu0
    %v559 = vpop.f32.mrb[0].mxu0
    %560 = vdwg.mxu0
    %561 = vmatprep.subr.bf16.mxu0 0
    %562 = vmatpush1.bf16.msra.mxu0 %v411
    %563 = vmatprep.subr.bf16.mxu0 0
    %564 = vmatpush1.bf16.msra.mxu0 %v412
    %565 = vmatprep.subr.bf16.mxu0 0
    %566 = vmatpush1.bf16.msra.mxu0 %v413
    %567 = vmatprep.subr.bf16.mxu0 0
    %568 = vmatpush1.bf16.msra.mxu0 %v414
    %569 = vmatprep.subr.bf16.mxu0 0
    %570 = vmatpush1.bf16.msra.mxu0 %v415
    %571 = vmatprep.subr.bf16.mxu0 0
    %572 = vmatpush1.bf16.msra.mxu0 %v416
    %573 = vmatprep.subr.bf16.mxu0 0
    %574 = vmatpush1.bf16.msra.mxu0 %v417
    %575 = vmatprep.subr.bf16.mxu0 0
    %576 = vmatpush1.bf16.msra.mxu0 %v418
    %577 = vmatprep.subr.bf16.mxu0 0
    %578 = vmatpush1.bf16.msra.mxu0 %v419
    %579 = vmatprep.subr.bf16.mxu0 0
    %580 = vmatpush1.bf16.msra.mxu0 %v420
    %581 = vmatprep.subr.bf16.mxu0 0
    %582 = vmatpush1.bf16.msra.mxu0 %v421
    %583 = vmatprep.subr.bf16.mxu0 0
    %584 = vmatpush1.bf16.msra.mxu0 %v422
    %585 = vmatprep.subr.bf16.mxu0 0
    %586 = vmatpush1.bf16.msra.mxu0 %v423
    %587 = vmatprep.subr.bf16.mxu0 0
    %588 = vmatpush1.bf16.msra.mxu0 %v424
    %589 = vmatprep.subr.bf16.mxu0 0
    %590 = vmatpush1.bf16.msra.mxu0 %v425
    %591 = vmatprep.subr.bf16.mxu0 0
    %592 = vmatpush1.bf16.msra.mxu0 %v426
    %593 = vmatprep.mubr.bf16.mxu0 %v173
    %594 = vmatmul.mubr.bf16.gmra.mrb[0].mxu0 %v159
    %v595 = vpop.f32.mrb[0].mxu0
    %v596 = vadd.f32 %v556, %v595
    %v597 = vpop.f32.mrb[0].mxu0
    %v598 = vpop.f32.mrb[0].mxu0
    %v599 = vpop.f32.mrb[0].mxu0
    %600 = vdwg.mxu0
    %601 = vmatprep.subr.bf16.mxu0 0
    %602 = vmatpush1.bf16.msra.mxu0 %v427
    %603 = vmatprep.subr.bf16.mxu0 0
    %604 = vmatpush1.bf16.msra.mxu0 0
    %605 = vmatprep.subr.bf16.mxu0 0
    %606 = vmatpush1.bf16.msra.mxu0 0
    %607 = vmatprep.subr.bf16.mxu0 0
    %608 = vmatpush1.bf16.msra.mxu0 0
    %609 = vmatprep.subr.bf16.mxu0 0
    %610 = vmatpush1.bf16.msra.mxu0 0
    %611 = vmatprep.subr.bf16.mxu0 0
    %612 = vmatpush1.bf16.msra.mxu0 0
    %613 = vmatprep.subr.bf16.mxu0 0
    %614 = vmatpush1.bf16.msra.mxu0 0
    %615 = vmatprep.subr.bf16.mxu0 0
    %616 = vmatpush1.bf16.msra.mxu0 0
    %617 = vmatprep.subr.bf16.mxu0 0
    %618 = vmatpush1.bf16.msra.mxu0 0
    %619 = vmatprep.subr.bf16.mxu0 0
    %620 = vmatpush1.bf16.msra.mxu0 0
    %621 = vmatprep.subr.bf16.mxu0 0
    %622 = vmatpush1.bf16.msra.mxu0 0
    %623 = vmatprep.subr.bf16.mxu0 0
    %624 = vmatpush1.bf16.msra.mxu0 0
    %625 = vmatprep.subr.bf16.mxu0 0
    %626 = vmatpush1.bf16.msra.mxu0 0
    %627 = vmatprep.subr.bf16.mxu0 0
    %628 = vmatpush1.bf16.msra.mxu0 0
    %629 = vmatprep.subr.bf16.mxu0 0
    %630 = vmatpush1.bf16.msra.mxu0 0
    %631 = vmatprep.subr.bf16.mxu0 0
    %632 = vmatpush1.bf16.msra.mxu0 0
    %633 = vmatprep.mubr.bf16.mxu0 0
    %634 = vmatmul.mubr.bf16.gmra.mrb[0].mxu0 %v479
    %v635 = vpop.f32.mrb[0].mxu0
    %v636 = vadd.f32 %v596, %v635
    %v637 = vpop.f32.mrb[0].mxu0
    %v638 = vpop.f32.mrb[0].mxu0
    %v639 = vpop.f32.mrb[0].mxu0
    %640 = vdwg.mxu0
    %v641 = vmax.f32 %v636, 0.0
    %v642 = vpack.c.bf16 %v641, %v641
    %v643 = vld [vmem:[%s3] sm:$0xf]
    %v644 = vld [vmem:[%s3 + $0x4] sm:$0xf]
    %v645 = vld [vmem:[%s3 + $0x8] sm:$0xf]
    %v646 = vld [vmem:[%s3 + $0xc] sm:$0xf]
    %v647 = vld [vmem:[%s4] sm:$0x1]
    %v649 = vlaneseq
    %v650 = vshrl.u32 %v649, 7
    %v651 = vsub.s32 0, %v650
    %v652 = vrot.slane %v647, %v651
    %v658 = vunpack.c.l.b16 %v643
    %v659 = vunpack.c.l.b16 %v644
    %v660 = vunpack.c.l.b16 %v645
    %v661 = vunpack.c.l.b16 %v646
    %v662 = vpack.c.b16 %v659, %v658
    %v663 = vpack.c.b16 %v661, %v660
    %vm666 = vcmask 261120
    %v668 = vsel %vm666, %v642, 0
    %670 = vmatprep.subr.bf16.mxu0 0
    %671 = vmatpush1.bf16.msra.mxu0 %v662
    %672 = vmatprep.subr.bf16.mxu0 0
    %673 = vmatpush1.bf16.msra.mxu0 %v663
    %674 = vmatprep.subr.bf16.mxu0 0
    %675 = vmatpush1.bf16.msra.mxu0 0
    %676 = vmatprep.subr.bf16.mxu0 0
    %677 = vmatpush1.bf16.msra.mxu0 0
    %678 = vmatprep.subr.bf16.mxu0 0
    %679 = vmatpush1.bf16.msra.mxu0 0
    %680 = vmatprep.subr.bf16.mxu0 0
    %681 = vmatpush1.bf16.msra.mxu0 0
    %682 = vmatprep.subr.bf16.mxu0 0
    %683 = vmatpush1.bf16.msra.mxu0 0
    %684 = vmatprep.subr.bf16.mxu0 0
    %685 = vmatpush1.bf16.msra.mxu0 0
    %686 = vmatprep.subr.bf16.mxu0 0
    %687 = vmatpush1.bf16.msra.mxu0 0
    %688 = vmatprep.subr.bf16.mxu0 0
    %689 = vmatpush1.bf16.msra.mxu0 0
    %690 = vmatprep.subr.bf16.mxu0 0
    %691 = vmatpush1.bf16.msra.mxu0 0
    %692 = vmatprep.subr.bf16.mxu0 0
    %693 = vmatpush1.bf16.msra.mxu0 0
    %694 = vmatprep.subr.bf16.mxu0 0
    %695 = vmatpush1.bf16.msra.mxu0 0
    %696 = vmatprep.subr.bf16.mxu0 0
    %697 = vmatpush1.bf16.msra.mxu0 0
    %698 = vmatprep.subr.bf16.mxu0 0
    %699 = vmatpush1.bf16.msra.mxu0 0
    %700 = vmatprep.subr.bf16.mxu0 0
    %701 = vmatpush1.bf16.msra.mxu0 0
    %702 = vmatprep.mubr.bf16.mxu0 0
    %703 = vmatmul.mubr.bf16.gmra.mrb[0].mxu0 %v668
    %v704 = vpop.f32.mrb[0].mxu0
    %v705 = vadd.f32 %v652, %v704
    %v706 = vpop.f32.mrb[0].mxu0
    %v707 = vpop.f32.mrb[0].mxu0
    %v708 = vpop.f32.mrb[0].mxu0
    %709 = vdwg.mxu0
    %v710 = vmax.f32 %v705, 0.0
    %vm711 = vcmask 123904
    %712 = vst.msk [vmem:[#allocation2] sm:$0x3] %vm711, %v710
    // Predicated region
    $region22: #{_lambda_.1} parent=1 // pred_check
      _
    $region23: #{_lambda_.1} parent=1 // pred_check_branch
      %714 = sbr.rel (0) target = $region25
    $region24: #{_lambda_.1} parent=1 // pred_region
      %s716 = ssub.s32 32, 32
      %717 = vsyncadd [#allocation3], %s716
      %s719 = sshll.u32 [#allocation2], 4
      %s720 = int_to_ptr.vmem [resolvable:$true] %s719
      %722 = dma.vmem_to_hbm [thread:$0]  %s720, 32, %s5, [#allocation3]
    $region25: #{_lambda_.1} parent=1 // pred_fallthru
      _
    // Predicated region
    $region26: #{_lambda_.1} parent=1 // pred_check
      _
    $region27: #{_lambda_.1} parent=1 // pred_check_branch
      %724 = sbr.rel (0) target = $region29
    $region28: #{_lambda_.1} parent=1 // pred_region
      %725 = dma.done [#allocation3], 32
    $region29: #{_lambda_.1} parent=1 // pred_fallthru
      _
    %726 = vsyncpa [#allocation3], 1

</llo_original>
